<compile_context>
chip_gen: v5e
topology: v5e:2x2
jax: 0.10.0
libtpu: 0.0.40
codegen_flags: <defaults>
</compile_context>

<pallas_src>
import jax
import jax.numpy as jnp
from jax import lax
from jax.experimental import pallas as pl
from jax.experimental.pallas import tpu as pltpu


# ---------------------------------------------------------------------------
# Fused nearest-2x upsample + 3x3 conv (padding=1), channels-last
# ---------------------------------------------------------------------------

def _upsample_conv_kernel(x0_ref, x1_ref, x2_ref, w_ref, b_ref, o_ref):
    """One zero-padded input row -> two output rows (all 4 parity phases).

    x{0,1,2}_ref: (1, 1, W+2, C_in)   padded input rows r, r+1, r+2
    w_ref:        (16, C_in, tco)     pre-combined sub-pixel weights [pr, rs, pc, cs]
    b_ref:        (1, tco)            bias (float32)
    o_ref:        (1, 2, 2, W, tco)   [row-parity, col-parity, W, C_out-tile]
    """
    wd = x0_ref.shape[2] - 2          # output column count per phase (== W)
    tco = o_ref.shape[-1]
    rows = (x0_ref, x1_ref, x2_ref)
    bias = b_ref[...]                 # (1, tco), already float32

    for pr in range(2):               # output row parity (rows 2r+pr)
        for pc in range(2):           # output col parity (cols 2c+pc)
            acc = jnp.zeros((wd, tco), jnp.float32)
            for rs in range(2):       # which of the 2 contributing input rows
                for cs in range(2):   # which of the 2 contributing input cols
                    xin = rows[pr + rs][0, 0, pc + cs: pc + cs + wd, :]   # (W, C_in)
                    wmat = w_ref[(pr * 2 + rs) * 4 + (pc * 2 + cs)]       # (C_in, tco)
                    acc = acc + jnp.dot(xin, wmat,
                                        preferred_element_type=jnp.float32)
            o_ref[0, pr, pc, :, :] = (acc + bias).astype(o_ref.dtype)


def _combine_subpixel_weights(conv_weight):
    """(C_out, C_in, 3, 3) torch conv weight -> (16, C_in, C_out) combined taps.

    Index layout: flat = (pr*2 + rs)*4 + (pc*2 + cs), where
      rows:  pr=0 -> {w[0]}, {w[1]+w[2]};   pr=1 -> {w[0]+w[1]}, {w[2]}
      cols:  same combination over the kw axis.
    """
    w = jnp.transpose(conv_weight, (2, 3, 1, 0))            # (kh, kw, C_in, C_out)
    row_comb = jnp.stack(
        [w[0], w[1] + w[2], w[0] + w[1], w[2]], axis=0)      # (4, 3, C_in, C_out)
    col_comb = jnp.stack(
        [row_comb[:, 0],
         row_comb[:, 1] + row_comb[:, 2],
         row_comb[:, 0] + row_comb[:, 1],
         row_comb[:, 2]], axis=1)                            # (4, 4, C_in, C_out)
    c_out, c_in = conv_weight.shape[0], conv_weight.shape[1]
    return col_comb.reshape(16, c_in, c_out)


def _upsample_conv2x_nchw(x_nchw, conv_weight, conv_bias, tco=None):
    B, C_in, H, W = x_nchw.shape
    C_out = conv_weight.shape[0]

    # C_out tile: keep the last dim a multiple of 128 (lane-dense) when possible.
    if tco is None:
        if C_out % 256 == 0:
            tco = 256
        elif C_out % 128 == 0:
            tco = 128
        else:
            tco = C_out
    assert C_out % tco == 0
    n_co = C_out // tco

    # channels-last + spatial zero-pad (handles the conv's padding=1 uniformly,
    # no in-kernel masking needed).
    x_nhwc = jnp.transpose(x_nchw, (0, 2, 3, 1))
    x_pad = jnp.pad(x_nhwc, ((0, 0), (1, 1), (1, 1), (0, 0)))      # (B, H+2, W+2, C_in)

    wc = _combine_subpixel_weights(conv_weight).astype(x_nchw.dtype)  # (16, C_in, C_out)
    b2d = conv_bias.reshape(1, C_out).astype(jnp.float32)

    def row_spec(k):
        return pl.BlockSpec((1, 1, W + 2, C_in),
                            lambda b, j, r, k=k: (b, r + k, 0, 0))

    out5 = pl.pallas_call(
        _upsample_conv_kernel,
        out_shape=jax.ShapeDtypeStruct((B, 2 * H, 2, W, C_out), x_nchw.dtype),
        grid_spec=pltpu.PrefetchScalarGridSpec(
            num_scalar_prefetch=0,
            grid=(B, n_co, H),            # innermost H streams rows; weight tile stays put
            in_specs=[
                row_spec(0), row_spec(1), row_spec(2),
                pl.BlockSpec((16, C_in, tco), lambda b, j, r: (0, 0, j)),
                pl.BlockSpec((1, tco), lambda b, j, r: (0, j)),
            ],
            out_specs=pl.BlockSpec((1, 2, 2, W, tco),
                                   lambda b, j, r: (b, r, 0, 0, j)),
        ),
        compiler_params=pltpu.CompilerParams(
            dimension_semantics=("parallel", "parallel", "parallel")),
    )(x_pad, x_pad, x_pad, wc, b2d)

    # (B, 2H, pc, W, C_out) -> NCHW with column index 2*w + pc.
    out = jnp.transpose(out5, (0, 4, 1, 3, 2)).reshape(B, C_out, 2 * H, 2 * W)
    return out


# ---------------------------------------------------------------------------
# Nearest-2x upsample only (use_conv=False)
# ---------------------------------------------------------------------------

def _nearest_kernel(x_ref, o_ref):
    # x_ref: (1, W, C);  o_ref: (1, 2, 2, W, C) = [row-parity, col-parity, W, C]
    row = x_ref[0]
    for p in range(2):
        for q in range(2):
            o_ref[0, p, q, :, :] = row


def _upsample_nearest2x_nchw(x_nchw):
    B, C, H, W = x_nchw.shape
    x_rows = jnp.transpose(x_nchw, (0, 2, 3, 1)).reshape(B * H, W, C)

    out5 = pl.pallas_call(
        _nearest_kernel,
        out_shape=jax.ShapeDtypeStruct((B * H, 2, 2, W, C), x_nchw.dtype),
        grid_spec=pltpu.PrefetchScalarGridSpec(
            num_scalar_prefetch=0,
            grid=(B * H,),
            in_specs=[pl.BlockSpec((1, W, C), lambda i: (i, 0, 0))],
            out_specs=pl.BlockSpec((1, 2, 2, W, C), lambda i: (i, 0, 0, 0, 0)),
        ),
        compiler_params=pltpu.CompilerParams(dimension_semantics=("parallel",)),
    )(x_rows)

    out6 = out5.reshape(B, H, 2, 2, W, C)
    # -> (B, C, H, p, W, q) -> (B, C, 2H, 2W) with indices (2r+p, 2w+q)
    return jnp.transpose(out6, (0, 5, 1, 2, 4, 3)).reshape(B, C, 2 * H, 2 * W)


# ---------------------------------------------------------------------------
# Module-equivalent forward
# ---------------------------------------------------------------------------

def upsample_forward(x, *, use_conv, conv_weight=None, conv_bias=None,
                     dims=2, padding=1):
    """Forward of mv_unet.Upsample (NCHW in / NCHW out), dims=2."""
    # TODO(synk): dims=1 (Conv1d) and dims=3 (inner-two-dim upsample + Conv3d) variants.
    assert dims == 2, "only dims=2 is implemented"
    if use_conv:
        assert padding == 1, "only the module default padding=1 is implemented"
        return _upsample_conv2x_nchw(x, conv_weight, conv_bias)
    return _upsample_nearest2x_nchw(x)


# ---------------------------------------------------------------------------
# Reference + test
# ---------------------------------------------------------------------------

def upsample_reference(x, use_conv, conv_weight=None, conv_bias=None):
    up = jnp.repeat(jnp.repeat(x, 2, axis=2), 2, axis=3)
    if not use_conv:
        return up
    out = lax.conv_general_dilated(
        up, conv_weight, window_strides=(1, 1), padding=((1, 1), (1, 1)),
        dimension_numbers=("NCHW", "OIHW", "NCHW"),
        precision=lax.Precision.HIGHEST)
    return out + conv_bias.reshape(1, -1, 1, 1)


if __name__ == "__main__":
    # Small shapes consistent with the module: (batch, channels, H, W).
    B, C, H, W = 2, 4, 16, 16
    C_out = 4  # default out_channels == channels

    key = jax.random.PRNGKey(0)
    kx, kw, kb = jax.random.split(key, 3)
    x = jax.random.normal(kx, (B, C, H, W), dtype=jnp.float32)
    w_pt = jax.random.normal(kw, (C_out, C, 3, 3), dtype=jnp.float32) / jnp.sqrt(9.0 * C)
    b_pt = jax.random.normal(kb, (C_out,), dtype=jnp.float32) * 0.01

    # use_conv=True path (fused upsample + conv kernel)
    out_conv = upsample_forward(x, use_conv=True, conv_weight=w_pt, conv_bias=b_pt)
    out_conv = jax.block_until_ready(out_conv)
    ref_conv = upsample_reference(x, True, w_pt, b_pt)
    assert out_conv.shape == (B, C_out, 2 * H, 2 * W)
    max_err = float(jnp.max(jnp.abs(out_conv - ref_conv)))
    assert jnp.allclose(out_conv, ref_conv, atol=1e-3, rtol=1e-3), max_err

    # use_conv=False path (pure nearest upsample kernel)
    out_up = upsample_forward(x, use_conv=False)
    out_up = jax.block_until_ready(out_up)
    ref_up = upsample_reference(x, False)
    assert out_up.shape == (B, C, 2 * H, 2 * W)
    assert jnp.allclose(out_up, ref_up)

    print("KERNEL_OK")
</pallas_src>

<mosaic_0001>
module attributes {stable_mosaic.version = 11 : i64} {
  func.func @_upsample_conv_kernel(%arg0: i32, %arg1: i32, %arg2: i32, %arg3: memref<1x1x18x4xf32, #tpu.memory_space<vmem>>, %arg4: memref<1x1x18x4xf32, #tpu.memory_space<vmem>>, %arg5: memref<1x1x18x4xf32, #tpu.memory_space<vmem>>, %arg6: memref<16x4x4xf32, #tpu.memory_space<vmem>>, %arg7: memref<1x4xf32, #tpu.memory_space<vmem>>, %arg8: memref<1x2x2x16x4xf32, #tpu.memory_space<vmem>>) attributes {dimension_semantics = [#tpu.dimension_semantics<parallel>, #tpu.dimension_semantics<parallel>, #tpu.dimension_semantics<parallel>], iteration_bounds = array<i64: 2, 1, 16>, scalar_prefetch = 0 : i64, scratch_operands = 0 : i64, tpu.core_type = #tpu.core_type<tc>, window_params = [{transform_indices = @transform_0, window_bounds = array<i64: 1, 1, 18, 4>}, {transform_indices = @transform_1, window_bounds = array<i64: 1, 1, 18, 4>}, {transform_indices = @transform_2, window_bounds = array<i64: 1, 1, 18, 4>}, {transform_indices = @transform_3, window_bounds = array<i64: 16, 4, 4>}, {transform_indices = @transform_4, window_bounds = array<i64: 1, 4>}, {transform_indices = @transform_5, window_bounds = array<i64: 1, 2, 2, 16, 4>}]} {
    %c0 = arith.constant 0 : index
    %c0_0 = arith.constant 0 : index
    %0 = vector.load %arg7[%c0, %c0_0] : memref<1x4xf32, #tpu.memory_space<vmem>>, vector<1x4xf32>
    %cst = arith.constant 0.000000e+00 : f32
    %1 = vector.broadcast %cst : f32 to vector<16x4xf32>
    %c0_1 = arith.constant 0 : index
    %c0_2 = arith.constant 0 : index
    %c0_3 = arith.constant 0 : index
    %c0_4 = arith.constant 0 : index
    %2 = vector.load %arg3[%c0_1, %c0_2, %c0_3, %c0_4] : memref<1x1x18x4xf32, #tpu.memory_space<vmem>>, vector<1x1x16x4xf32>
    %3 = vector.shape_cast %2 : vector<1x1x16x4xf32> to vector<16x4xf32>
    %c0_5 = arith.constant 0 : index
    %c0_6 = arith.constant 0 : index
    %c0_7 = arith.constant 0 : index
    %4 = vector.load %arg6[%c0_5, %c0_6, %c0_7] : memref<16x4x4xf32, #tpu.memory_space<vmem>>, vector<1x4x4xf32>
    %5 = vector.shape_cast %4 : vector<1x4x4xf32> to vector<4x4xf32>
    %cst_8 = arith.constant dense<0.000000e+00> : vector<16x4xf32>
    %6 = tpu.matmul %3, %5, %cst_8 {dimension_numbers = #tpu.dot_dimension_numbers<[1], [0], [0], [1], [0, 0, 1, 1], [], []>} : vector<16x4xf32>, vector<4x4xf32>, vector<16x4xf32> -> vector<16x4xf32>
    %7 = arith.addf %1, %6 : vector<16x4xf32>
    %c0_9 = arith.constant 0 : index
    %c0_10 = arith.constant 0 : index
    %c1 = arith.constant 1 : index
    %c0_11 = arith.constant 0 : index
    %8 = vector.load %arg3[%c0_9, %c0_10, %c1, %c0_11] : memref<1x1x18x4xf32, #tpu.memory_space<vmem>>, vector<1x1x16x4xf32>
    %9 = vector.shape_cast %8 : vector<1x1x16x4xf32> to vector<16x4xf32>
    %c1_12 = arith.constant 1 : index
    %c0_13 = arith.constant 0 : index
    %c0_14 = arith.constant 0 : index
    %10 = vector.load %arg6[%c1_12, %c0_13, %c0_14] : memref<16x4x4xf32, #tpu.memory_space<vmem>>, vector<1x4x4xf32>
    %11 = vector.shape_cast %10 : vector<1x4x4xf32> to vector<4x4xf32>
    %cst_15 = arith.constant dense<0.000000e+00> : vector<16x4xf32>
    %12 = tpu.matmul %9, %11, %cst_15 {dimension_numbers = #tpu.dot_dimension_numbers<[1], [0], [0], [1], [0, 0, 1, 1], [], []>} : vector<16x4xf32>, vector<4x4xf32>, vector<16x4xf32> -> vector<16x4xf32>
    %13 = arith.addf %7, %12 : vector<16x4xf32>
    %c0_16 = arith.constant 0 : index
    %c0_17 = arith.constant 0 : index
    %c0_18 = arith.constant 0 : index
    %c0_19 = arith.constant 0 : index
    %14 = vector.load %arg4[%c0_16, %c0_17, %c0_18, %c0_19] : memref<1x1x18x4xf32, #tpu.memory_space<vmem>>, vector<1x1x16x4xf32>
    %15 = vector.shape_cast %14 : vector<1x1x16x4xf32> to vector<16x4xf32>
    %c4 = arith.constant 4 : index
    %c0_20 = arith.constant 0 : index
    %c0_21 = arith.constant 0 : index
    %16 = vector.load %arg6[%c4, %c0_20, %c0_21] : memref<16x4x4xf32, #tpu.memory_space<vmem>>, vector<1x4x4xf32>
    %17 = vector.shape_cast %16 : vector<1x4x4xf32> to vector<4x4xf32>
    %cst_22 = arith.constant dense<0.000000e+00> : vector<16x4xf32>
    %18 = tpu.matmul %15, %17, %cst_22 {dimension_numbers = #tpu.dot_dimension_numbers<[1], [0], [0], [1], [0, 0, 1, 1], [], []>} : vector<16x4xf32>, vector<4x4xf32>, vector<16x4xf32> -> vector<16x4xf32>
    %19 = arith.addf %13, %18 : vector<16x4xf32>
    %c0_23 = arith.constant 0 : index
    %c0_24 = arith.constant 0 : index
    %c1_25 = arith.constant 1 : index
    %c0_26 = arith.constant 0 : index
    %20 = vector.load %arg4[%c0_23, %c0_24, %c1_25, %c0_26] : memref<1x1x18x4xf32, #tpu.memory_space<vmem>>, vector<1x1x16x4xf32>
    %21 = vector.shape_cast %20 : vector<1x1x16x4xf32> to vector<16x4xf32>
    %c5 = arith.constant 5 : index
    %c0_27 = arith.constant 0 : index
    %c0_28 = arith.constant 0 : index
    %22 = vector.load %arg6[%c5, %c0_27, %c0_28] : memref<16x4x4xf32, #tpu.memory_space<vmem>>, vector<1x4x4xf32>
    %23 = vector.shape_cast %22 : vector<1x4x4xf32> to vector<4x4xf32>
    %cst_29 = arith.constant dense<0.000000e+00> : vector<16x4xf32>
    %24 = tpu.matmul %21, %23, %cst_29 {dimension_numbers = #tpu.dot_dimension_numbers<[1], [0], [0], [1], [0, 0, 1, 1], [], []>} : vector<16x4xf32>, vector<4x4xf32>, vector<16x4xf32> -> vector<16x4xf32>
    %25 = arith.addf %19, %24 : vector<16x4xf32>
    %26 = vector.broadcast %0 : vector<1x4xf32> to vector<16x4xf32>
    %27 = arith.addf %25, %26 : vector<16x4xf32>
    %c0_30 = arith.constant 0 : index
    %c0_31 = arith.constant 0 : index
    %c0_32 = arith.constant 0 : index
    %c0_33 = arith.constant 0 : index
    %c0_34 = arith.constant 0 : index
    %28 = vector.load %arg8[%c0_30, %c0_31, %c0_32, %c0_33, %c0_34] : memref<1x2x2x16x4xf32, #tpu.memory_space<vmem>>, vector<1x1x1x16x4xf32>
    %29 = vector.shape_cast %28 : vector<1x1x1x16x4xf32> to vector<16x4xf32>
    %30 = vector.shape_cast %27 : vector<16x4xf32> to vector<1x1x1x16x4xf32>
    tpu.vector_store %arg8[%c0_30, %c0_31, %c0_32, %c0_33, %c0_34], %30 {strides = array<i32>} : memref<1x2x2x16x4xf32, #tpu.memory_space<vmem>>, vector<1x1x1x16x4xf32>,
    %cst_35 = arith.constant 0.000000e+00 : f32
    %31 = vector.broadcast %cst_35 : f32 to vector<16x4xf32>
    %c0_36 = arith.constant 0 : index
    %c0_37 = arith.constant 0 : index
    %c1_38 = arith.constant 1 : index
    %c0_39 = arith.constant 0 : index
    %32 = vector.load %arg3[%c0_36, %c0_37, %c1_38, %c0_39] : memref<1x1x18x4xf32, #tpu.memory_space<vmem>>, vector<1x1x16x4xf32>
    %33 = vector.shape_cast %32 : vector<1x1x16x4xf32> to vector<16x4xf32>
    %c2 = arith.constant 2 : index
    %c0_40 = arith.constant 0 : index
    %c0_41 = arith.constant 0 : index
    %34 = vector.load %arg6[%c2, %c0_40, %c0_41] : memref<16x4x4xf32, #tpu.memory_space<vmem>>, vector<1x4x4xf32>
    %35 = vector.shape_cast %34 : vector<1x4x4xf32> to vector<4x4xf32>
    %cst_42 = arith.constant dense<0.000000e+00> : vector<16x4xf32>
    %36 = tpu.matmul %33, %35, %cst_42 {dimension_numbers = #tpu.dot_dimension_numbers<[1], [0], [0], [1], [0, 0, 1, 1], [], []>} : vector<16x4xf32>, vector<4x4xf32>, vector<16x4xf32> -> vector<16x4xf32>
    %37 = arith.addf %31, %36 : vector<16x4xf32>
    %c0_43 = arith.constant 0 : index
    %c0_44 = arith.constant 0 : index
    %c2_45 = arith.constant 2 : index
    %c0_46 = arith.constant 0 : index
    %38 = vector.load %arg3[%c0_43, %c0_44, %c2_45, %c0_46] : memref<1x1x18x4xf32, #tpu.memory_space<vmem>>, vector<1x1x16x4xf32>
    %39 = vector.shape_cast %38 : vector<1x1x16x4xf32> to vector<16x4xf32>
    %c3 = arith.constant 3 : index
    %c0_47 = arith.constant 0 : index
    %c0_48 = arith.constant 0 : index
    %40 = vector.load %arg6[%c3, %c0_47, %c0_48] : memref<16x4x4xf32, #tpu.memory_space<vmem>>, vector<1x4x4xf32>
    %41 = vector.shape_cast %40 : vector<1x4x4xf32> to vector<4x4xf32>
    %cst_49 = arith.constant dense<0.000000e+00> : vector<16x4xf32>
    %42 = tpu.matmul %39, %41, %cst_49 {dimension_numbers = #tpu.dot_dimension_numbers<[1], [0], [0], [1], [0, 0, 1, 1], [], []>} : vector<16x4xf32>, vector<4x4xf32>, vector<16x4xf32> -> vector<16x4xf32>
    %43 = arith.addf %37, %42 : vector<16x4xf32>
    %c0_50 = arith.constant 0 : index
    %c0_51 = arith.constant 0 : index
    %c1_52 = arith.constant 1 : index
    %c0_53 = arith.constant 0 : index
    %44 = vector.load %arg4[%c0_50, %c0_51, %c1_52, %c0_53] : memref<1x1x18x4xf32, #tpu.memory_space<vmem>>, vector<1x1x16x4xf32>
    %45 = vector.shape_cast %44 : vector<1x1x16x4xf32> to vector<16x4xf32>
    %c6 = arith.constant 6 : index
    %c0_54 = arith.constant 0 : index
    %c0_55 = arith.constant 0 : index
    %46 = vector.load %arg6[%c6, %c0_54, %c0_55] : memref<16x4x4xf32, #tpu.memory_space<vmem>>, vector<1x4x4xf32>
    %47 = vector.shape_cast %46 : vector<1x4x4xf32> to vector<4x4xf32>
    %cst_56 = arith.constant dense<0.000000e+00> : vector<16x4xf32>
    %48 = tpu.matmul %45, %47, %cst_56 {dimension_numbers = #tpu.dot_dimension_numbers<[1], [0], [0], [1], [0, 0, 1, 1], [], []>} : vector<16x4xf32>, vector<4x4xf32>, vector<16x4xf32> -> vector<16x4xf32>
    %49 = arith.addf %43, %48 : vector<16x4xf32>
    %c0_57 = arith.constant 0 : index
    %c0_58 = arith.constant 0 : index
    %c2_59 = arith.constant 2 : index
    %c0_60 = arith.constant 0 : index
    %50 = vector.load %arg4[%c0_57, %c0_58, %c2_59, %c0_60] : memref<1x1x18x4xf32, #tpu.memory_space<vmem>>, vector<1x1x16x4xf32>
    %51 = vector.shape_cast %50 : vector<1x1x16x4xf32> to vector<16x4xf32>
    %c7 = arith.constant 7 : index
    %c0_61 = arith.constant 0 : index
    %c0_62 = arith.constant 0 : index
    %52 = vector.load %arg6[%c7, %c0_61, %c0_62] : memref<16x4x4xf32, #tpu.memory_space<vmem>>, vector<1x4x4xf32>
    %53 = vector.shape_cast %52 : vector<1x4x4xf32> to vector<4x4xf32>
    %cst_63 = arith.constant dense<0.000000e+00> : vector<16x4xf32>
    %54 = tpu.matmul %51, %53, %cst_63 {dimension_numbers = #tpu.dot_dimension_numbers<[1], [0], [0], [1], [0, 0, 1, 1], [], []>} : vector<16x4xf32>, vector<4x4xf32>, vector<16x4xf32> -> vector<16x4xf32>
    %55 = arith.addf %49, %54 : vector<16x4xf32>
    %56 = vector.broadcast %0 : vector<1x4xf32> to vector<16x4xf32>
    %57 = arith.addf %55, %56 : vector<16x4xf32>
    %c0_64 = arith.constant 0 : index
    %c0_65 = arith.constant 0 : index
    %c1_66 = arith.constant 1 : index
    %c0_67 = arith.constant 0 : index
    %c0_68 = arith.constant 0 : index
    %58 = vector.load %arg8[%c0_64, %c0_65, %c1_66, %c0_67, %c0_68] : memref<1x2x2x16x4xf32, #tpu.memory_space<vmem>>, vector<1x1x1x16x4xf32>
    %59 = vector.shape_cast %58 : vector<1x1x1x16x4xf32> to vector<16x4xf32>
    %60 = vector.shape_cast %57 : vector<16x4xf32> to vector<1x1x1x16x4xf32>
    tpu.vector_store %arg8[%c0_64, %c0_65, %c1_66, %c0_67, %c0_68], %60 {strides = array<i32>} : memref<1x2x2x16x4xf32, #tpu.memory_space<vmem>>, vector<1x1x1x16x4xf32>,
    %cst_69 = arith.constant 0.000000e+00 : f32
    %61 = vector.broadcast %cst_69 : f32 to vector<16x4xf32>
    %c0_70 = arith.constant 0 : index
    %c0_71 = arith.constant 0 : index
    %c0_72 = arith.constant 0 : index
    %c0_73 = arith.constant 0 : index
    %62 = vector.load %arg4[%c0_70, %c0_71, %c0_72, %c0_73] : memref<1x1x18x4xf32, #tpu.memory_space<vmem>>, vector<1x1x16x4xf32>
    %63 = vector.shape_cast %62 : vector<1x1x16x4xf32> to vector<16x4xf32>
    %c8 = arith.constant 8 : index
    %c0_74 = arith.constant 0 : index
    %c0_75 = arith.constant 0 : index
    %64 = vector.load %arg6[%c8, %c0_74, %c0_75] : memref<16x4x4xf32, #tpu.memory_space<vmem>>, vector<1x4x4xf32>
    %65 = vector.shape_cast %64 : vector<1x4x4xf32> to vector<4x4xf32>
    %cst_76 = arith.constant dense<0.000000e+00> : vector<16x4xf32>
    %66 = tpu.matmul %63, %65, %cst_76 {dimension_numbers = #tpu.dot_dimension_numbers<[1], [0], [0], [1], [0, 0, 1, 1], [], []>} : vector<16x4xf32>, vector<4x4xf32>, vector<16x4xf32> -> vector<16x4xf32>
    %67 = arith.addf %61, %66 : vector<16x4xf32>
    %c0_77 = arith.constant 0 : index
    %c0_78 = arith.constant 0 : index
    %c1_79 = arith.constant 1 : index
    %c0_80 = arith.constant 0 : index
    %68 = vector.load %arg4[%c0_77, %c0_78, %c1_79, %c0_80] : memref<1x1x18x4xf32, #tpu.memory_space<vmem>>, vector<1x1x16x4xf32>
    %69 = vector.shape_cast %68 : vector<1x1x16x4xf32> to vector<16x4xf32>
    %c9 = arith.constant 9 : index
    %c0_81 = arith.constant 0 : index
    %c0_82 = arith.constant 0 : index
    %70 = vector.load %arg6[%c9, %c0_81, %c0_82] : memref<16x4x4xf32, #tpu.memory_space<vmem>>, vector<1x4x4xf32>
    %71 = vector.shape_cast %70 : vector<1x4x4xf32> to vector<4x4xf32>
    %cst_83 = arith.constant dense<0.000000e+00> : vector<16x4xf32>
    %72 = tpu.matmul %69, %71, %cst_83 {dimension_numbers = #tpu.dot_dimension_numbers<[1], [0], [0], [1], [0, 0, 1, 1], [], []>} : vector<16x4xf32>, vector<4x4xf32>, vector<16x4xf32> -> vector<16x4xf32>
    %73 = arith.addf %67, %72 : vector<16x4xf32>
    %c0_84 = arith.constant 0 : index
    %c0_85 = arith.constant 0 : index
    %c0_86 = arith.constant 0 : index
    %c0_87 = arith.constant 0 : index
    %74 = vector.load %arg5[%c0_84, %c0_85, %c0_86, %c0_87] : memref<1x1x18x4xf32, #tpu.memory_space<vmem>>, vector<1x1x16x4xf32>
    %75 = vector.shape_cast %74 : vector<1x1x16x4xf32> to vector<16x4xf32>
    %c12 = arith.constant 12 : index
    %c0_88 = arith.constant 0 : index
    %c0_89 = arith.constant 0 : index
    %76 = vector.load %arg6[%c12, %c0_88, %c0_89] : memref<16x4x4xf32, #tpu.memory_space<vmem>>, vector<1x4x4xf32>
    %77 = vector.shape_cast %76 : vector<1x4x4xf32> to vector<4x4xf32>
    %cst_90 = arith.constant dense<0.000000e+00> : vector<16x4xf32>
    %78 = tpu.matmul %75, %77, %cst_90 {dimension_numbers = #tpu.dot_dimension_numbers<[1], [0], [0], [1], [0, 0, 1, 1], [], []>} : vector<16x4xf32>, vector<4x4xf32>, vector<16x4xf32> -> vector<16x4xf32>
    %79 = arith.addf %73, %78 : vector<16x4xf32>
    %c0_91 = arith.constant 0 : index
    %c0_92 = arith.constant 0 : index
    %c1_93 = arith.constant 1 : index
    %c0_94 = arith.constant 0 : index
    %80 = vector.load %arg5[%c0_91, %c0_92, %c1_93, %c0_94] : memref<1x1x18x4xf32, #tpu.memory_space<vmem>>, vector<1x1x16x4xf32>
    %81 = vector.shape_cast %80 : vector<1x1x16x4xf32> to vector<16x4xf32>
    %c13 = arith.constant 13 : index
    %c0_95 = arith.constant 0 : index
    %c0_96 = arith.constant 0 : index
    %82 = vector.load %arg6[%c13, %c0_95, %c0_96] : memref<16x4x4xf32, #tpu.memory_space<vmem>>, vector<1x4x4xf32>
    %83 = vector.shape_cast %82 : vector<1x4x4xf32> to vector<4x4xf32>
    %cst_97 = arith.constant dense<0.000000e+00> : vector<16x4xf32>
    %84 = tpu.matmul %81, %83, %cst_97 {dimension_numbers = #tpu.dot_dimension_numbers<[1], [0], [0], [1], [0, 0, 1, 1], [], []>} : vector<16x4xf32>, vector<4x4xf32>, vector<16x4xf32> -> vector<16x4xf32>
    %85 = arith.addf %79, %84 : vector<16x4xf32>
    %86 = vector.broadcast %0 : vector<1x4xf32> to vector<16x4xf32>
    %87 = arith.addf %85, %86 : vector<16x4xf32>
    %c0_98 = arith.constant 0 : index
    %c1_99 = arith.constant 1 : index
    %c0_100 = arith.constant 0 : index
    %c0_101 = arith.constant 0 : index
    %c0_102 = arith.constant 0 : index
    %88 = vector.load %arg8[%c0_98, %c1_99, %c0_100, %c0_101, %c0_102] : memref<1x2x2x16x4xf32, #tpu.memory_space<vmem>>, vector<1x1x1x16x4xf32>
    %89 = vector.shape_cast %88 : vector<1x1x1x16x4xf32> to vector<16x4xf32>
    %90 = vector.shape_cast %87 : vector<16x4xf32> to vector<1x1x1x16x4xf32>
    tpu.vector_store %arg8[%c0_98, %c1_99, %c0_100, %c0_101, %c0_102], %90 {strides = array<i32>} : memref<1x2x2x16x4xf32, #tpu.memory_space<vmem>>, vector<1x1x1x16x4xf32>,
    %cst_103 = arith.constant 0.000000e+00 : f32
    %91 = vector.broadcast %cst_103 : f32 to vector<16x4xf32>
    %c0_104 = arith.constant 0 : index
    %c0_105 = arith.constant 0 : index
    %c1_106 = arith.constant 1 : index
    %c0_107 = arith.constant 0 : index
    %92 = vector.load %arg4[%c0_104, %c0_105, %c1_106, %c0_107] : memref<1x1x18x4xf32, #tpu.memory_space<vmem>>, vector<1x1x16x4xf32>
    %93 = vector.shape_cast %92 : vector<1x1x16x4xf32> to vector<16x4xf32>
    %c10 = arith.constant 10 : index
    %c0_108 = arith.constant 0 : index
    %c0_109 = arith.constant 0 : index
    %94 = vector.load %arg6[%c10, %c0_108, %c0_109] : memref<16x4x4xf32, #tpu.memory_space<vmem>>, vector<1x4x4xf32>
    %95 = vector.shape_cast %94 : vector<1x4x4xf32> to vector<4x4xf32>
    %cst_110 = arith.constant dense<0.000000e+00> : vector<16x4xf32>
    %96 = tpu.matmul %93, %95, %cst_110 {dimension_numbers = #tpu.dot_dimension_numbers<[1], [0], [0], [1], [0, 0, 1, 1], [], []>} : vector<16x4xf32>, vector<4x4xf32>, vector<16x4xf32> -> vector<16x4xf32>
    %97 = arith.addf %91, %96 : vector<16x4xf32>
    %c0_111 = arith.constant 0 : index
    %c0_112 = arith.constant 0 : index
    %c2_113 = arith.constant 2 : index
    %c0_114 = arith.constant 0 : index
    %98 = vector.load %arg4[%c0_111, %c0_112, %c2_113, %c0_114] : memref<1x1x18x4xf32, #tpu.memory_space<vmem>>, vector<1x1x16x4xf32>
    %99 = vector.shape_cast %98 : vector<1x1x16x4xf32> to vector<16x4xf32>
    %c11 = arith.constant 11 : index
    %c0_115 = arith.constant 0 : index
    %c0_116 = arith.constant 0 : index
    %100 = vector.load %arg6[%c11, %c0_115, %c0_116] : memref<16x4x4xf32, #tpu.memory_space<vmem>>, vector<1x4x4xf32>
    %101 = vector.shape_cast %100 : vector<1x4x4xf32> to vector<4x4xf32>
    %cst_117 = arith.constant dense<0.000000e+00> : vector<16x4xf32>
    %102 = tpu.matmul %99, %101, %cst_117 {dimension_numbers = #tpu.dot_dimension_numbers<[1], [0], [0], [1], [0, 0, 1, 1], [], []>} : vector<16x4xf32>, vector<4x4xf32>, vector<16x4xf32> -> vector<16x4xf32>
    %103 = arith.addf %97, %102 : vector<16x4xf32>
    %c0_118 = arith.constant 0 : index
    %c0_119 = arith.constant 0 : index
    %c1_120 = arith.constant 1 : index
    %c0_121 = arith.constant 0 : index
    %104 = vector.load %arg5[%c0_118, %c0_119, %c1_120, %c0_121] : memref<1x1x18x4xf32, #tpu.memory_space<vmem>>, vector<1x1x16x4xf32>
    %105 = vector.shape_cast %104 : vector<1x1x16x4xf32> to vector<16x4xf32>
    %c14 = arith.constant 14 : index
    %c0_122 = arith.constant 0 : index
    %c0_123 = arith.constant 0 : index
    %106 = vector.load %arg6[%c14, %c0_122, %c0_123] : memref<16x4x4xf32, #tpu.memory_space<vmem>>, vector<1x4x4xf32>
    %107 = vector.shape_cast %106 : vector<1x4x4xf32> to vector<4x4xf32>
    %cst_124 = arith.constant dense<0.000000e+00> : vector<16x4xf32>
    %108 = tpu.matmul %105, %107, %cst_124 {dimension_numbers = #tpu.dot_dimension_numbers<[1], [0], [0], [1], [0, 0, 1, 1], [], []>} : vector<16x4xf32>, vector<4x4xf32>, vector<16x4xf32> -> vector<16x4xf32>
    %109 = arith.addf %103, %108 : vector<16x4xf32>
    %c0_125 = arith.constant 0 : index
    %c0_126 = arith.constant 0 : index
    %c2_127 = arith.constant 2 : index
    %c0_128 = arith.constant 0 : index
    %110 = vector.load %arg5[%c0_125, %c0_126, %c2_127, %c0_128] : memref<1x1x18x4xf32, #tpu.memory_space<vmem>>, vector<1x1x16x4xf32>
    %111 = vector.shape_cast %110 : vector<1x1x16x4xf32> to vector<16x4xf32>
    %c15 = arith.constant 15 : index
    %c0_129 = arith.constant 0 : index
    %c0_130 = arith.constant 0 : index
    %112 = vector.load %arg6[%c15, %c0_129, %c0_130] : memref<16x4x4xf32, #tpu.memory_space<vmem>>, vector<1x4x4xf32>
    %113 = vector.shape_cast %112 : vector<1x4x4xf32> to vector<4x4xf32>
    %cst_131 = arith.constant dense<0.000000e+00> : vector<16x4xf32>
    %114 = tpu.matmul %111, %113, %cst_131 {dimension_numbers = #tpu.dot_dimension_numbers<[1], [0], [0], [1], [0, 0, 1, 1], [], []>} : vector<16x4xf32>, vector<4x4xf32>, vector<16x4xf32> -> vector<16x4xf32>
    %115 = arith.addf %109, %114 : vector<16x4xf32>
    %116 = vector.broadcast %0 : vector<1x4xf32> to vector<16x4xf32>
    %117 = arith.addf %115, %116 : vector<16x4xf32>
    %c0_132 = arith.constant 0 : index
    %c1_133 = arith.constant 1 : index
    %c1_134 = arith.constant 1 : index
    %c0_135 = arith.constant 0 : index
    %c0_136 = arith.constant 0 : index
    %118 = vector.load %arg8[%c0_132, %c1_133, %c1_134, %c0_135, %c0_136] : memref<1x2x2x16x4xf32, #tpu.memory_space<vmem>>, vector<1x1x1x16x4xf32>
    %119 = vector.shape_cast %118 : vector<1x1x1x16x4xf32> to vector<16x4xf32>
    %120 = vector.shape_cast %117 : vector<16x4xf32> to vector<1x1x1x16x4xf32>
    tpu.vector_store %arg8[%c0_132, %c1_133, %c1_134, %c0_135, %c0_136], %120 {strides = array<i32>} : memref<1x2x2x16x4xf32, #tpu.memory_space<vmem>>, vector<1x1x1x16x4xf32>,
    return
  }
  func.func @transform_0(%arg0: i32, %arg1: i32, %arg2: i32) -> (i32, i32, i32, i32) {
    %c0_i32 = arith.constant 0 : i32
    %0 = arith.addi %arg2, %c0_i32 : i32
    %c0_i32_0 = arith.constant 0 : i32
    %c0_i32_1 = arith.constant 0 : i32
    %c0_i32_2 = arith.constant 0 : i32
    return %arg0, %0, %c0_i32_0, %c0_i32_1 : i32, i32, i32, i32
  }
  func.func @transform_1(%arg0: i32, %arg1: i32, %arg2: i32) -> (i32, i32, i32, i32) {
    %c1_i32 = arith.constant 1 : i32
    %0 = arith.addi %arg2, %c1_i32 : i32
    %c0_i32 = arith.constant 0 : i32
    %c0_i32_0 = arith.constant 0 : i32
    %c0_i32_1 = arith.constant 0 : i32
    return %arg0, %0, %c0_i32, %c0_i32_0 : i32, i32, i32, i32
  }
  func.func @transform_2(%arg0: i32, %arg1: i32, %arg2: i32) -> (i32, i32, i32, i32) {
    %c2_i32 = arith.constant 2 : i32
    %0 = arith.addi %arg2, %c2_i32 : i32
    %c0_i32 = arith.constant 0 : i32
    %c0_i32_0 = arith.constant 0 : i32
    %c0_i32_1 = arith.constant 0 : i32
    return %arg0, %0, %c0_i32, %c0_i32_0 : i32, i32, i32, i32
  }
  func.func @transform_3(%arg0: i32, %arg1: i32, %arg2: i32) -> (i32, i32, i32) {
    %c0_i32 = arith.constant 0 : i32
    %c0_i32_0 = arith.constant 0 : i32
    %c0_i32_1 = arith.constant 0 : i32
    return %c0_i32, %c0_i32_0, %arg1 : i32, i32, i32
  }
  func.func @transform_4(%arg0: i32, %arg1: i32, %arg2: i32) -> (i32, i32) {
    %c0_i32 = arith.constant 0 : i32
    %c0_i32_0 = arith.constant 0 : i32
    return %c0_i32, %arg1 : i32, i32
  }
  func.func @transform_5(%arg0: i32, %arg1: i32, %arg2: i32) -> (i32, i32, i32, i32, i32) {
    %c0_i32 = arith.constant 0 : i32
    %c0_i32_0 = arith.constant 0 : i32
    %c0_i32_1 = arith.constant 0 : i32
    return %arg0, %arg2, %c0_i32, %c0_i32_0, %arg1 : i32, i32, i32, i32, i32
  }
}

</mosaic_0001>

<llo_original>
// kernel: tpu_custom_call.1
$region0: #{tpu_custom_call.1}
  #allocation0 [shape = 'u32[]', space=smem, size = 0x4, offset = 0x4, fixed_abs, tag = 'smem constant byte address 0x4 - core index']
  #allocation1 [shape = 'u32[72,128]{1,0:T(1,128)}', space=vmem, size = 0x9000, scoped, tag = 'internal scratch']
  %s0 = inlined_call_operand.vmem [shape: f32[2,18,18,4], index: 0, kind: input, shape index: {}]
  %s1 = inlined_call_operand.vmem [shape: f32[2,18,18,4], index: 1, kind: input, shape index: {}]
  %s2 = inlined_call_operand.vmem [shape: f32[2,18,18,4], index: 2, kind: input, shape index: {}]
  %s3 = inlined_call_operand.vmem [shape: f32[16,4,4], index: 3, kind: input, shape index: {}]
  %s4 = inlined_call_operand.vmem [shape: f32[1,4], index: 4, kind: input, shape index: {}]
  %s5 = inlined_call_operand.vmem [shape: f32[2,32,2,16,4], index: 5, kind: output, shape index: {}]
  %s6 = sld [smem:[#allocation0]]
  $region53: #{tpu_custom_call.1} parent=0
    _
  %s8 = ssub.s32 1, %s6
  %s9 = scalar_select 0, %s8, %s6
  loop: start=0, step=1, limit=34
  $region2: #{tpu_custom_call.1} parent=0 // loop_pre_header
    _
  $region3: #{tpu_custom_call.1} parent=0 // loop_header
    %s11 = sphi 0, %s15
    %p12 = scmp.ge.s32.totalorder %s11, 34
    %s18 = sphi 0, %s37
    %s19 = sphi 0, %s33
    %s20 = sphi 0, %s29
    %s21 = sphi 0, %s18
    %s22 = sphi 0, %s19
    %s23 = sphi 0, %s20
    %s24 = sphi 0, %s21
    %s25 = sphi 0, %s22
    %s26 = sphi 0, %s23
    %s42 = sphi 0, %s44
    %s45 = sphi 0, %s42
    %s46 = sphi 0, %s45
    %s62 = sphi 0, %s46
    %s72 = sphi 0, %s74
    %s75 = sphi 0, %s72
    %s76 = sphi 0, %s75
    %s92 = sphi 0, %s76
    %s102 = sphi 0, %s104
    %s105 = sphi 0, %s102
    %s106 = sphi 0, %s105
    %s122 = sphi 0, %s106
    %s128 = sphi 0, %s130
    %s131 = sphi 0, %s128
    %s132 = sphi 0, %s131
    %s148 = sphi 0, %s132
    %s154 = sphi 0, %s156
    %s157 = sphi 0, %s154
    %s158 = sphi 0, %s157
    %s174 = sphi 0, %s158
    %s184 = sphi 0, %s186
    %s187 = sphi 0, %s184
    %s188 = sphi 0, %s187
    %s204 = sphi 0, %s188
  $region4: #{tpu_custom_call.1} parent=0 // loop_header_branch
    %14 = sbr.rel (%p12) target = $region8
  $region5: #{tpu_custom_call.1} parent=0 // loop_body
    %s16 = ssub.s32 %s11, 1
    %s17 = ssub.s32 %s11, 2
    %s27 = sadd.s32 1, %s20
    %p28 = scmp.ge.s32.totalorder %s27, 16
    %s29 = scalar_select %p28, 0, %s27
    %s30 = sadd.s32 1, %s19
    %s31 = scalar_select %p28, %s30, %s19
    %p32 = scmp.ge.s32.totalorder %s31, 1
    %s33 = scalar_select %p32, 0, %s31
    %s34 = sadd.s32 1, %s18
    %s35 = scalar_select %p32, %s34, %s18
    %p36 = scmp.ge.s32.totalorder %s35, 2
    %s37 = scalar_select %p36, 0, %s35
    %s38 = ssub.s32 %s18, %s37
    %s39 = ssub.s32 %s20, %s29
    %s40 = sor.u32 %s38, %s39
    %p41 = scmp.eq.s32.totalorder %s40, 0
    %s43 = sadd.s32 %s42, 1
    %s44 = scalar_select %p41, %s42, %s43
    %p47 = pneg %p41
    %p48 = scmp.eq.s32.totalorder %s11, 31
    %p49 = por %p47, %p48
    %p50 = scmp.ne.s32.totalorder %s42, %s45
    %p51 = scmp.eq.s32.totalorder %s11, 0
    %p52 = por %p50, %p51
    %p53 = scmp.ne.s32.totalorder %s42, %s45
    %p54 = scmp.eq.s32.totalorder %s16, 31
    %p55 = por %p53, %p54
    %p56 = scmp.ne.s32.totalorder %s45, %s46
    %p57 = scmp.eq.s32.totalorder %s16, 0
    %p58 = por %p56, %p57
    %p59 = scmp.ne.s32.totalorder %s45, %s46
    %p60 = scmp.eq.s32.totalorder %s17, 31
    %p61 = por %p59, %p60
    %p63 = scmp.ne.s32.totalorder %s46, %s62
    %p64 = scmp.eq.s32.totalorder %s17, 0
    %p65 = por %p63, %p64
    %s66 = sadd.s32 %s20, 1
    %s67 = sadd.s32 %s29, 1
    %s68 = ssub.s32 %s18, %s37
    %s69 = ssub.s32 %s66, %s67
    %s70 = sor.u32 %s68, %s69
    %p71 = scmp.eq.s32.totalorder %s70, 0
    %s73 = sadd.s32 %s72, 1
    %s74 = scalar_select %p71, %s72, %s73
    %p77 = pneg %p71
    %p78 = scmp.eq.s32.totalorder %s11, 31
    %p79 = por %p77, %p78
    %p80 = scmp.ne.s32.totalorder %s72, %s75
    %p81 = scmp.eq.s32.totalorder %s11, 0
    %p82 = por %p80, %p81
    %p83 = scmp.ne.s32.totalorder %s72, %s75
    %p84 = scmp.eq.s32.totalorder %s16, 31
    %p85 = por %p83, %p84
    %p86 = scmp.ne.s32.totalorder %s75, %s76
    %p87 = scmp.eq.s32.totalorder %s16, 0
    %p88 = por %p86, %p87
    %p89 = scmp.ne.s32.totalorder %s75, %s76
    %p90 = scmp.eq.s32.totalorder %s17, 31
    %p91 = por %p89, %p90
    %p93 = scmp.ne.s32.totalorder %s76, %s92
    %p94 = scmp.eq.s32.totalorder %s17, 0
    %p95 = por %p93, %p94
    %s96 = sadd.s32 %s20, 2
    %s97 = sadd.s32 %s29, 2
    %s98 = ssub.s32 %s18, %s37
    %s99 = ssub.s32 %s96, %s97
    %s100 = sor.u32 %s98, %s99
    %p101 = scmp.eq.s32.totalorder %s100, 0
    %s103 = sadd.s32 %s102, 1
    %s104 = scalar_select %p101, %s102, %s103
    %p107 = pneg %p101
    %p108 = scmp.eq.s32.totalorder %s11, 31
    %p109 = por %p107, %p108
    %p110 = scmp.ne.s32.totalorder %s102, %s105
    %p111 = scmp.eq.s32.totalorder %s11, 0
    %p112 = por %p110, %p111
    %p113 = scmp.ne.s32.totalorder %s102, %s105
    %p114 = scmp.eq.s32.totalorder %s16, 31
    %p115 = por %p113, %p114
    %p116 = scmp.ne.s32.totalorder %s105, %s106
    %p117 = scmp.eq.s32.totalorder %s16, 0
    %p118 = por %p116, %p117
    %p119 = scmp.ne.s32.totalorder %s105, %s106
    %p120 = scmp.eq.s32.totalorder %s17, 31
    %p121 = por %p119, %p120
    %p123 = scmp.ne.s32.totalorder %s106, %s122
    %p124 = scmp.eq.s32.totalorder %s17, 0
    %p125 = por %p123, %p124
    %s126 = ssub.s32 %s19, %s33
    %p127 = scmp.eq.s32.totalorder %s126, 0
    %s129 = sadd.s32 %s128, 1
    %s130 = scalar_select %p127, %s128, %s129
    %p133 = pneg %p127
    %p134 = scmp.eq.s32.totalorder %s11, 31
    %p135 = por %p133, %p134
    %p136 = scmp.ne.s32.totalorder %s128, %s131
    %p137 = scmp.eq.s32.totalorder %s11, 0
    %p138 = por %p136, %p137
    %p139 = scmp.ne.s32.totalorder %s128, %s131
    %p140 = scmp.eq.s32.totalorder %s16, 31
    %p141 = por %p139, %p140
    %p142 = scmp.ne.s32.totalorder %s131, %s132
    %p143 = scmp.eq.s32.totalorder %s16, 0
    %p144 = por %p142, %p143
    %p145 = scmp.ne.s32.totalorder %s131, %s132
    %p146 = scmp.eq.s32.totalorder %s17, 31
    %p147 = por %p145, %p146
    %p149 = scmp.ne.s32.totalorder %s132, %s148
    %p150 = scmp.eq.s32.totalorder %s17, 0
    %p151 = por %p149, %p150
    %s152 = ssub.s32 %s19, %s33
    %p153 = scmp.eq.s32.totalorder %s152, 0
    %s155 = sadd.s32 %s154, 1
    %s156 = scalar_select %p153, %s154, %s155
    %p159 = pneg %p153
    %p160 = scmp.eq.s32.totalorder %s11, 31
    %p161 = por %p159, %p160
    %p162 = scmp.ne.s32.totalorder %s154, %s157
    %p163 = scmp.eq.s32.totalorder %s11, 0
    %p164 = por %p162, %p163
    %p165 = scmp.ne.s32.totalorder %s154, %s157
    %p166 = scmp.eq.s32.totalorder %s16, 31
    %p167 = por %p165, %p166
    %p168 = scmp.ne.s32.totalorder %s157, %s158
    %p169 = scmp.eq.s32.totalorder %s16, 0
    %p170 = por %p168, %p169
    %p171 = scmp.ne.s32.totalorder %s157, %s158
    %p172 = scmp.eq.s32.totalorder %s17, 31
    %p173 = por %p171, %p172
    %p175 = scmp.ne.s32.totalorder %s158, %s174
    %p176 = scmp.eq.s32.totalorder %s17, 0
    %p177 = por %p175, %p176
    %s178 = ssub.s32 %s18, %s37
    %s179 = ssub.s32 %s20, %s29
    %s180 = sor.u32 %s178, %s179
    %s181 = ssub.s32 %s19, %s33
    %s182 = sor.u32 %s180, %s181
    %p183 = scmp.eq.s32.totalorder %s182, 0
    %s185 = sadd.s32 %s184, 1
    %s186 = scalar_select %p183, %s184, %s185
    %p189 = pneg %p183
    %p190 = scmp.eq.s32.totalorder %s11, 31
    %p191 = por %p189, %p190
    %p192 = scmp.ne.s32.totalorder %s184, %s187
    %p193 = scmp.eq.s32.totalorder %s11, 0
    %p194 = por %p192, %p193
    %p195 = scmp.ne.s32.totalorder %s184, %s187
    %p196 = scmp.eq.s32.totalorder %s16, 31
    %p197 = por %p195, %p196
    %p198 = scmp.ne.s32.totalorder %s187, %s188
    %p199 = scmp.eq.s32.totalorder %s16, 0
    %p200 = por %p198, %p199
    %p201 = scmp.ne.s32.totalorder %s187, %s188
    %p202 = scmp.eq.s32.totalorder %s17, 31
    %p203 = por %p201, %p202
    %p205 = scmp.ne.s32.totalorder %s188, %s204
    %p206 = scmp.eq.s32.totalorder %s17, 0
    %p207 = por %p205, %p206
    %p208 = scmp.le.s32.totalorder 1, %s11
    %p209 = scmp.lt.s32.totalorder %s11, 33
    %p210 = pnand %p208, %p209
    %p211 = pneg %p210
    // Predicated region
    $region9: #{tpu_custom_call.1} parent=5 // pred_check
      _
    $region10: #{tpu_custom_call.1} parent=5 // pred_check_branch
      %213 = sbr.rel (%p210) target = $region12
    $region11: #{tpu_custom_call.1} parent=5 // pred_region
      %s214 = ssub.s32 %s11, 1
      // Predicated region
      $region13: #{tpu_custom_call.1} parent=11 // pred_check
        %p215 = pneg %p144
      $region14: #{tpu_custom_call.1} parent=11 // pred_check_branch
        %217 = sbr.rel (%p215) target = $region16
      $region15: #{tpu_custom_call.1} parent=11 // pred_region
        %p218 = scmp.lt.s32.totalorder %s22, 0
        %s219 = scalar_select %p218, %s22, 0
        %s220 = smul.addr %s219, 4
        %s221 = scalar_lea.vmem %s3, %s220
      $region16: #{tpu_custom_call.1} parent=11 // pred_fallthru
        _
      // Predicated region
      $region17: #{tpu_custom_call.1} parent=11 // pred_check
        %p222 = pneg %p170
      $region18: #{tpu_custom_call.1} parent=11 // pred_check_branch
        %224 = sbr.rel (%p222) target = $region20
      $region19: #{tpu_custom_call.1} parent=11 // pred_region
        %p225 = scmp.lt.s32.totalorder %s22, 0
        %s226 = scalar_select %p225, %s22, 0
        %s227 = scalar_lea.vmem %s4, %s226
      $region20: #{tpu_custom_call.1} parent=11 // pred_fallthru
        _
    $region12: #{tpu_custom_call.1} parent=5 // pred_fallthru
      _
    %p228 = scmp.lt.s32.totalorder %s11, 32
    // Predicated region
    $region21: #{tpu_custom_call.1} parent=5 // pred_check
      %p229 = pneg %p228
    $region22: #{tpu_custom_call.1} parent=5 // pred_check_branch
      %231 = sbr.rel (%p229) target = $region24
    $region23: #{tpu_custom_call.1} parent=5 // pred_region
      // Predicated region
      $region25: #{tpu_custom_call.1} parent=23 // pred_check
        %p232 = pneg %p52
      $region26: #{tpu_custom_call.1} parent=23 // pred_check_branch
        %234 = sbr.rel (%p232) target = $region28
      $region27: #{tpu_custom_call.1} parent=23 // pred_region
        %p235 = scmp.lt.s32.totalorder %s18, 1
        %s236 = scalar_select %p235, %s18, 1
        %p237 = scmp.lt.s32.totalorder %s20, 17
        %s238 = scalar_select %p237, %s20, 17
        %s239 = smul.addr %s238, 3
        %s240 = smul.addr %s236, 54
        %s241 = sadd.s32 %s239, %s240
        %s242 = smul.addr %s241, 8
        %s243 = scalar_lea.vmem %s0, %s242
      $region28: #{tpu_custom_call.1} parent=23 // pred_fallthru
        _
      // Predicated region
      $region29: #{tpu_custom_call.1} parent=23 // pred_check
        %p244 = pneg %p82
      $region30: #{tpu_custom_call.1} parent=23 // pred_check_branch
        %246 = sbr.rel (%p244) target = $region32
      $region31: #{tpu_custom_call.1} parent=23 // pred_region
        %s247 = sadd.s32 %s20, 1
        %p248 = scmp.lt.s32.totalorder %s18, 1
        %s249 = scalar_select %p248, %s18, 1
        %p250 = scmp.lt.s32.totalorder %s247, 17
        %s251 = scalar_select %p250, %s247, 17
        %s252 = smul.addr %s251, 3
        %s253 = smul.addr %s249, 54
        %s254 = sadd.s32 %s252, %s253
        %s255 = smul.addr %s254, 8
        %s256 = scalar_lea.vmem %s1, %s255
        %s257 = sadd.s32 %s20, 1
      $region32: #{tpu_custom_call.1} parent=23 // pred_fallthru
        _
      // Predicated region
      $region33: #{tpu_custom_call.1} parent=23 // pred_check
        %p258 = pneg %p112
      $region34: #{tpu_custom_call.1} parent=23 // pred_check_branch
        %260 = sbr.rel (%p258) target = $region36
      $region35: #{tpu_custom_call.1} parent=23 // pred_region
        %s261 = sadd.s32 %s20, 2
        %p262 = scmp.lt.s32.totalorder %s18, 1
        %s263 = scalar_select %p262, %s18, 1
        %p264 = scmp.lt.s32.totalorder %s261, 17
        %s265 = scalar_select %p264, %s261, 17
        %s266 = smul.addr %s265, 3
        %s267 = smul.addr %s263, 54
        %s268 = sadd.s32 %s266, %s267
        %s269 = smul.addr %s268, 8
        %s270 = scalar_lea.vmem %s2, %s269
        %s271 = sadd.s32 %s20, 2
      $region36: #{tpu_custom_call.1} parent=23 // pred_fallthru
        _
    $region24: #{tpu_custom_call.1} parent=5 // pred_fallthru
      _
    %p272 = scmp.le.s32.totalorder 1, %s11
    %p273 = scmp.lt.s32.totalorder %s11, 33
    %p274 = pnand %p272, %p273
    %p275 = pneg %p274
    // Predicated region
    $region37: #{tpu_custom_call.1} parent=5 // pred_check
      _
    $region38: #{tpu_custom_call.1} parent=5 // pred_check_branch
      %277 = sbr.rel (%p274) target = $region40
    $region39: #{tpu_custom_call.1} parent=5 // pred_region
      %s278 = ssub.s32 %s11, 1
      %p279 = scmp.lt.s32.totalorder %s21, 1
      %s280 = scalar_select %p279, %s21, 1
      %p281 = scmp.lt.s32.totalorder %s23, 17
      %s282 = scalar_select %p281, %s23, 17
      %s283 = smul.addr %s282, 3
      %s284 = smul.addr %s280, 54
      %s285 = sadd.s32 %s283, %s284
      %s286 = smul.addr %s285, 8
      %s287 = scalar_lea.vmem %s0, %s286
      %p288 = pneg %p58
      %p289 = pneg %p55
      %s290 = sadd.s32 %s23, 1
      %p291 = scmp.lt.s32.totalorder %s21, 1
      %s292 = scalar_select %p291, %s21, 1
      %p293 = scmp.lt.s32.totalorder %s290, 17
      %s294 = scalar_select %p293, %s290, 17
      %s295 = smul.addr %s294, 3
      %s296 = smul.addr %s292, 54
      %s297 = sadd.s32 %s295, %s296
      %s298 = smul.addr %s297, 8
      %s299 = scalar_lea.vmem %s1, %s298
      %p300 = pneg %p88
      %p301 = pneg %p85
      %s302 = sadd.s32 %s23, 2
      %p303 = scmp.lt.s32.totalorder %s21, 1
      %s304 = scalar_select %p303, %s21, 1
      %p305 = scmp.lt.s32.totalorder %s302, 17
      %s306 = scalar_select %p305, %s302, 17
      %s307 = smul.addr %s306, 3
      %s308 = smul.addr %s304, 54
      %s309 = sadd.s32 %s307, %s308
      %s310 = smul.addr %s309, 8
      %s311 = scalar_lea.vmem %s2, %s310
      %p312 = pneg %p118
      %p313 = pneg %p115
      %p314 = scmp.lt.s32.totalorder %s22, 0
      %s315 = scalar_select %p314, %s22, 0
      %s316 = smul.addr %s315, 4
      %s317 = scalar_lea.vmem %s3, %s316
      %p318 = pneg %p144
      %p319 = pneg %p141
      %p320 = scmp.lt.s32.totalorder %s22, 0
      %s321 = scalar_select %p320, %s22, 0
      %s322 = scalar_lea.vmem %s4, %s321
      %p323 = pneg %p170
      %p324 = pneg %p167
      %p325 = pneg %p200
      %p326 = pneg %p197
      %s327 = smul.u32 2, %s23
      %p328 = scmp.lt.s32.totalorder %s21, 1
      %s329 = scalar_select %p328, %s21, 1
      %p330 = scmp.lt.s32.totalorder %s327, 31
      %s331 = scalar_select %p330, %s327, 31
      %p332 = scmp.lt.s32.totalorder %s22, 0
      %s333 = scalar_select %p332, %s22, 0
      %s334 = smul.addr %s331, 4
      %s335 = sadd.s32 %s333, %s334
      %s336 = smul.addr %s329, 128
      %s337 = sadd.s32 %s335, %s336
      %s338 = smul.addr %s337, 8
      %s339 = scalar_lea.vmem %s5, %s338
      %p340 = scmp.lt.s32.totalorder %s21, 1
      %s341 = scalar_select %p340, %s21, 1
      %p342 = scmp.lt.s32.totalorder %s23, 17
      %s343 = scalar_select %p342, %s23, 17
      %s344 = smul.addr %s343, 3
      %s345 = smul.addr %s341, 54
      %s346 = sadd.s32 %s344, %s345
      %s347 = smul.addr %s346, 8
      %s348 = scalar_lea.vmem %s0, %s347
      %s349 = sadd.s32 %s23, 1
      %p350 = scmp.lt.s32.totalorder %s21, 1
      %s351 = scalar_select %p350, %s21, 1
      %p352 = scmp.lt.s32.totalorder %s349, 17
      %s353 = scalar_select %p352, %s349, 17
      %s354 = smul.addr %s353, 3
      %s355 = smul.addr %s351, 54
      %s356 = sadd.s32 %s354, %s355
      %s357 = smul.addr %s356, 8
      %s358 = scalar_lea.vmem %s1, %s357
      %s359 = sadd.s32 %s23, 1
      %s360 = sadd.s32 %s23, 2
      %p361 = scmp.lt.s32.totalorder %s21, 1
      %s362 = scalar_select %p361, %s21, 1
      %p363 = scmp.lt.s32.totalorder %s360, 17
      %s364 = scalar_select %p363, %s360, 17
      %s365 = smul.addr %s364, 3
      %s366 = smul.addr %s362, 54
      %s367 = sadd.s32 %s365, %s366
      %s368 = smul.addr %s367, 8
      %s369 = scalar_lea.vmem %s2, %s368
      %s370 = sadd.s32 %s23, 2
      %p371 = scmp.lt.s32.totalorder %s22, 0
      %s372 = scalar_select %p371, %s22, 0
      %s373 = smul.addr %s372, 4
      %s374 = scalar_lea.vmem %s3, %s373
      %p375 = scmp.lt.s32.totalorder %s22, 0
      %s376 = scalar_select %p375, %s22, 0
      %s377 = scalar_lea.vmem %s4, %s376
      %s378 = smul.u32 2, %s23
      %p379 = scmp.lt.s32.totalorder %s21, 1
      %s380 = scalar_select %p379, %s21, 1
      %p381 = scmp.lt.s32.totalorder %s378, 31
      %s382 = scalar_select %p381, %s378, 31
      %p383 = scmp.lt.s32.totalorder %s22, 0
      %s384 = scalar_select %p383, %s22, 0
      %s385 = smul.addr %s382, 4
      %s386 = sadd.s32 %s384, %s385
      %s387 = smul.addr %s380, 128
      %s388 = sadd.s32 %s386, %s387
      %s389 = smul.addr %s388, 8
      %s390 = scalar_lea.vmem %s5, %s389
      %s391 = smul.u32 2, %s23
      %v392 = vld [vmem:[%s377] sm:$0x1]
      %v393 = vld [vmem:[%s348] sm:$0xff]
      %v394 = vld [vmem:[%s348 + $0x8] sm:$0xff]
      %v395 = vld [vmem:[%s374] sm:$0xf]
      %v396 = vld [vmem:[%s348 + $0x1] sm:$0xff]
      %v397 = vld [vmem:[%s348 + $0x9] sm:$0xff]
      %s398 = scalar_lea.vmem %s374, 4
      %v399 = vld [vmem:[%s398] sm:$0xf]
      %vm400 = vcmask 31744
      %v402 = vsel %vm400, %v396, 0
      %v405 = vsel %vm400, %v397, 0
      %vm407 = vcmask 1043456
      %v409 = vsel %vm407, %v399, 0
      %411 = vmatpush.msra.mxu0 0.0
      %412 = vmatpush.msra.mxu0 0.0
      %413 = vmatpush.msra.mxu0 0.0
      %414 = vmatpush.msra.mxu0 0.0
      %415 = vmatpush.msra.mxu0 0.0
      %416 = vmatpush.msra.mxu0 0.0
      %417 = vmatpush.msra.mxu0 0.0
      %418 = vmatpush.msra.mxu0 0.0
      %419 = vmatpush.msra.mxu0 0.0
      %420 = vmatpush.msra.mxu0 0.0
      %421 = vmatpush.msra.mxu0 0.0
      %422 = vmatpush.msra.mxu0 0.0
      %423 = vmatpush.msra.mxu0 0.0
      %424 = vmatpush.msra.mxu0 0.0
      %425 = vmatpush.msra.mxu0 0.0
      %426 = vmatpush.msra.mxu0 %v409
      %427 = vmatmul.f32.gmra.mxu0 %v402
      %v428 = vpop.f32.mrf.mxu0
      %v429 = vadd.f32 0.0, %v428
      %430 = vmatmul.f32.gmra.mxu0 %v405
      %v431 = vpop.f32.mrf.mxu0
      %v432 = vadd.f32 0.0, %v431
      %433 = vdwg.mxu0
      %v435 = vsel %vm400, %v393, 0
      %v438 = vsel %vm400, %v394, 0
      %v441 = vsel %vm407, %v395, 0
      %443 = vmatpush.msra.mxu0 0.0
      %444 = vmatpush.msra.mxu0 0.0
      %445 = vmatpush.msra.mxu0 0.0
      %446 = vmatpush.msra.mxu0 0.0
      %447 = vmatpush.msra.mxu0 0.0
      %448 = vmatpush.msra.mxu0 0.0
      %449 = vmatpush.msra.mxu0 0.0
      %450 = vmatpush.msra.mxu0 0.0
      %451 = vmatpush.msra.mxu0 0.0
      %452 = vmatpush.msra.mxu0 0.0
      %453 = vmatpush.msra.mxu0 0.0
      %454 = vmatpush.msra.mxu0 0.0
      %455 = vmatpush.msra.mxu0 0.0
      %456 = vmatpush.msra.mxu0 0.0
      %457 = vmatpush.msra.mxu0 0.0
      %458 = vmatpush.msra.mxu0 %v441
      %459 = vmatmul.f32.gmra.mxu0 %v435
      %v460 = vpop.f32.mrf.mxu0
      %v461 = vadd.f32 %v429, %v460
      %462 = vmatmul.f32.gmra.mxu0 %v438
      %v463 = vpop.f32.mrf.mxu0
      %v464 = vadd.f32 %v432, %v463
      %465 = vdwg.mxu0
      %v466 = vld [vmem:[%s358] sm:$0xff]
      %v467 = vld [vmem:[%s358 + $0x8] sm:$0xff]
      %s468 = scalar_lea.vmem %s374, 16
      %v469 = vld [vmem:[%s468] sm:$0xf]
      %v471 = vsel %vm400, %v466, 0
      %v474 = vsel %vm400, %v467, 0
      %v477 = vsel %vm407, %v469, 0
      %479 = vmatpush.msra.mxu0 0.0
      %480 = vmatpush.msra.mxu0 0.0
      %481 = vmatpush.msra.mxu0 0.0
      %482 = vmatpush.msra.mxu0 0.0
      %483 = vmatpush.msra.mxu0 0.0
      %484 = vmatpush.msra.mxu0 0.0
      %485 = vmatpush.msra.mxu0 0.0
      %486 = vmatpush.msra.mxu0 0.0
      %487 = vmatpush.msra.mxu0 0.0
      %488 = vmatpush.msra.mxu0 0.0
      %489 = vmatpush.msra.mxu0 0.0
      %490 = vmatpush.msra.mxu0 0.0
      %491 = vmatpush.msra.mxu0 0.0
      %492 = vmatpush.msra.mxu0 0.0
      %493 = vmatpush.msra.mxu0 0.0
      %494 = vmatpush.msra.mxu0 %v477
      %495 = vmatmul.f32.gmra.mxu0 %v471
      %v496 = vpop.f32.mrf.mxu0
      %v497 = vadd.f32 0.0, %v496
      %498 = vmatmul.f32.gmra.mxu0 %v474
      %v499 = vpop.f32.mrf.mxu0
      %v500 = vadd.f32 0.0, %v499
      %501 = vdwg.mxu0
      %v502 = vadd.f32 %v461, %v497
      %v503 = vadd.f32 %v464, %v500
      %v504 = vld [vmem:[%s358 + $0x1] sm:$0xff]
      %v505 = vld [vmem:[%s358 + $0x9] sm:$0xff]
      %s506 = scalar_lea.vmem %s374, 20
      %v507 = vld [vmem:[%s506] sm:$0xf]
      %v509 = vsel %vm400, %v504, 0
      %v512 = vsel %vm400, %v505, 0
      %v515 = vsel %vm407, %v507, 0
      %517 = vmatpush.msra.mxu0 0.0
      %518 = vmatpush.msra.mxu0 0.0
      %519 = vmatpush.msra.mxu0 0.0
      %520 = vmatpush.msra.mxu0 0.0
      %521 = vmatpush.msra.mxu0 0.0
      %522 = vmatpush.msra.mxu0 0.0
      %523 = vmatpush.msra.mxu0 0.0
      %524 = vmatpush.msra.mxu0 0.0
      %525 = vmatpush.msra.mxu0 0.0
      %526 = vmatpush.msra.mxu0 0.0
      %527 = vmatpush.msra.mxu0 0.0
      %528 = vmatpush.msra.mxu0 0.0
      %529 = vmatpush.msra.mxu0 0.0
      %530 = vmatpush.msra.mxu0 0.0
      %531 = vmatpush.msra.mxu0 0.0
      %532 = vmatpush.msra.mxu0 %v515
      %533 = vmatmul.f32.gmra.mxu0 %v509
      %v534 = vpop.f32.mrf.mxu0
      %v535 = vadd.f32 0.0, %v534
      %536 = vmatmul.f32.gmra.mxu0 %v512
      %v537 = vpop.f32.mrf.mxu0
      %v538 = vadd.f32 0.0, %v537
      %539 = vdwg.mxu0
      %v540 = vadd.f32 %v502, %v535
      %v541 = vadd.f32 %v503, %v538
      %v543 = vperm.slane %v392, 0
      %v545 = vadd.f32 %v540, %v543
      %v546 = vadd.f32 %v541, %v543
      %547 = vst.msk [vmem:[%s390] sm:$0xff] %vm400, %v545
      %548 = vst.msk [vmem:[%s390 + $0x8] sm:$0xff] %vm400, %v546
      %v549 = vld [vmem:[%s348 + $0x1] sm:$0xff]
      %v550 = vld [vmem:[%s348 + $0x9] sm:$0xff]
      %s551 = scalar_lea.vmem %s374, 8
      %v552 = vld [vmem:[%s551] sm:$0xf]
      %v553 = vld [vmem:[%s348 + $0x2] sm:$0xff]
      %v554 = vld [vmem:[%s348 + $0xa] sm:$0xff]
      %s555 = scalar_lea.vmem %s374, 12
      %v556 = vld [vmem:[%s555] sm:$0xf]
      %v558 = vsel %vm400, %v553, 0
      %v561 = vsel %vm400, %v554, 0
      %v564 = vsel %vm407, %v556, 0
      %566 = vmatpush.msra.mxu0 0.0
      %567 = vmatpush.msra.mxu0 0.0
      %568 = vmatpush.msra.mxu0 0.0
      %569 = vmatpush.msra.mxu0 0.0
      %570 = vmatpush.msra.mxu0 0.0
      %571 = vmatpush.msra.mxu0 0.0
      %572 = vmatpush.msra.mxu0 0.0
      %573 = vmatpush.msra.mxu0 0.0
      %574 = vmatpush.msra.mxu0 0.0
      %575 = vmatpush.msra.mxu0 0.0
      %576 = vmatpush.msra.mxu0 0.0
      %577 = vmatpush.msra.mxu0 0.0
      %578 = vmatpush.msra.mxu0 0.0
      %579 = vmatpush.msra.mxu0 0.0
      %580 = vmatpush.msra.mxu0 0.0
      %581 = vmatpush.msra.mxu0 %v564
      %582 = vmatmul.f32.gmra.mxu0 %v558
      %v583 = vpop.f32.mrf.mxu0
      %v584 = vadd.f32 0.0, %v583
      %585 = vmatmul.f32.gmra.mxu0 %v561
      %v586 = vpop.f32.mrf.mxu0
      %v587 = vadd.f32 0.0, %v586
      %588 = vdwg.mxu0
      %v590 = vsel %vm400, %v549, 0
      %v593 = vsel %vm400, %v550, 0
      %v596 = vsel %vm407, %v552, 0
      %598 = vmatpush.msra.mxu0 0.0
      %599 = vmatpush.msra.mxu0 0.0
      %600 = vmatpush.msra.mxu0 0.0
      %601 = vmatpush.msra.mxu0 0.0
      %602 = vmatpush.msra.mxu0 0.0
      %603 = vmatpush.msra.mxu0 0.0
      %604 = vmatpush.msra.mxu0 0.0
      %605 = vmatpush.msra.mxu0 0.0
      %606 = vmatpush.msra.mxu0 0.0
      %607 = vmatpush.msra.mxu0 0.0
      %608 = vmatpush.msra.mxu0 0.0
      %609 = vmatpush.msra.mxu0 0.0
      %610 = vmatpush.msra.mxu0 0.0
      %611 = vmatpush.msra.mxu0 0.0
      %612 = vmatpush.msra.mxu0 0.0
      %613 = vmatpush.msra.mxu0 %v596
      %614 = vmatmul.f32.gmra.mxu0 %v590
      %v615 = vpop.f32.mrf.mxu0
      %v616 = vadd.f32 %v584, %v615
      %617 = vmatmul.f32.gmra.mxu0 %v593
      %v618 = vpop.f32.mrf.mxu0
      %v619 = vadd.f32 %v587, %v618
      %620 = vdwg.mxu0
      %v621 = vld [vmem:[%s358 + $0x1] sm:$0xff]
      %v622 = vld [vmem:[%s358 + $0x9] sm:$0xff]
      %s623 = scalar_lea.vmem %s374, 24
      %v624 = vld [vmem:[%s623] sm:$0xf]
      %v626 = vsel %vm400, %v621, 0
      %v629 = vsel %vm400, %v622, 0
      %v632 = vsel %vm407, %v624, 0
      %634 = vmatpush.msra.mxu0 0.0
      %635 = vmatpush.msra.mxu0 0.0
      %636 = vmatpush.msra.mxu0 0.0
      %637 = vmatpush.msra.mxu0 0.0
      %638 = vmatpush.msra.mxu0 0.0
      %639 = vmatpush.msra.mxu0 0.0
      %640 = vmatpush.msra.mxu0 0.0
      %641 = vmatpush.msra.mxu0 0.0
      %642 = vmatpush.msra.mxu0 0.0
      %643 = vmatpush.msra.mxu0 0.0
      %644 = vmatpush.msra.mxu0 0.0
      %645 = vmatpush.msra.mxu0 0.0
      %646 = vmatpush.msra.mxu0 0.0
      %647 = vmatpush.msra.mxu0 0.0
      %648 = vmatpush.msra.mxu0 0.0
      %649 = vmatpush.msra.mxu0 %v632
      %650 = vmatmul.f32.gmra.mxu0 %v626
      %v651 = vpop.f32.mrf.mxu0
      %v652 = vadd.f32 0.0, %v651
      %653 = vmatmul.f32.gmra.mxu0 %v629
      %v654 = vpop.f32.mrf.mxu0
      %v655 = vadd.f32 0.0, %v654
      %656 = vdwg.mxu0
      %v657 = vadd.f32 %v616, %v652
      %v658 = vadd.f32 %v619, %v655
      %v659 = vld [vmem:[%s358 + $0x2] sm:$0xff]
      %v660 = vld [vmem:[%s358 + $0xa] sm:$0xff]
      %s661 = scalar_lea.vmem %s374, 28
      %v662 = vld [vmem:[%s661] sm:$0xf]
      %v664 = vsel %vm400, %v659, 0
      %v667 = vsel %vm400, %v660, 0
      %v670 = vsel %vm407, %v662, 0
      %672 = vmatpush.msra.mxu0 0.0
      %673 = vmatpush.msra.mxu0 0.0
      %674 = vmatpush.msra.mxu0 0.0
      %675 = vmatpush.msra.mxu0 0.0
      %676 = vmatpush.msra.mxu0 0.0
      %677 = vmatpush.msra.mxu0 0.0
      %678 = vmatpush.msra.mxu0 0.0
      %679 = vmatpush.msra.mxu0 0.0
      %680 = vmatpush.msra.mxu0 0.0
      %681 = vmatpush.msra.mxu0 0.0
      %682 = vmatpush.msra.mxu0 0.0
      %683 = vmatpush.msra.mxu0 0.0
      %684 = vmatpush.msra.mxu0 0.0
      %685 = vmatpush.msra.mxu0 0.0
      %686 = vmatpush.msra.mxu0 0.0
      %687 = vmatpush.msra.mxu0 %v670
      %688 = vmatmul.f32.gmra.mxu0 %v664
      %v689 = vpop.f32.mrf.mxu0
      %v690 = vadd.f32 0.0, %v689
      %691 = vmatmul.f32.gmra.mxu0 %v667
      %v692 = vpop.f32.mrf.mxu0
      %v693 = vadd.f32 0.0, %v692
      %694 = vdwg.mxu0
      %v695 = vadd.f32 %v657, %v690
      %v696 = vadd.f32 %v658, %v693
      %v697 = vadd.f32 %v695, %v543
      %v698 = vadd.f32 %v696, %v543
      %s699 = scalar_lea.vmem %s390, 16
      %700 = vst.msk [vmem:[%s699] sm:$0xff] %vm400, %v697
      %701 = vst.msk [vmem:[%s699 + $0x8] sm:$0xff] %vm400, %v698
      %v702 = vld [vmem:[%s358] sm:$0xff]
      %v703 = vld [vmem:[%s358 + $0x8] sm:$0xff]
      %s704 = scalar_lea.vmem %s374, 32
      %v705 = vld [vmem:[%s704] sm:$0xf]
      %v706 = vld [vmem:[%s358 + $0x1] sm:$0xff]
      %v707 = vld [vmem:[%s358 + $0x9] sm:$0xff]
      %s708 = scalar_lea.vmem %s374, 36
      %v709 = vld [vmem:[%s708] sm:$0xf]
      %v711 = vsel %vm400, %v706, 0
      %v714 = vsel %vm400, %v707, 0
      %v717 = vsel %vm407, %v709, 0
      %719 = vmatpush.msra.mxu0 0.0
      %720 = vmatpush.msra.mxu0 0.0
      %721 = vmatpush.msra.mxu0 0.0
      %722 = vmatpush.msra.mxu0 0.0
      %723 = vmatpush.msra.mxu0 0.0
      %724 = vmatpush.msra.mxu0 0.0
      %725 = vmatpush.msra.mxu0 0.0
      %726 = vmatpush.msra.mxu0 0.0
      %727 = vmatpush.msra.mxu0 0.0
      %728 = vmatpush.msra.mxu0 0.0
      %729 = vmatpush.msra.mxu0 0.0
      %730 = vmatpush.msra.mxu0 0.0
      %731 = vmatpush.msra.mxu0 0.0
      %732 = vmatpush.msra.mxu0 0.0
      %733 = vmatpush.msra.mxu0 0.0
      %734 = vmatpush.msra.mxu0 %v717
      %735 = vmatmul.f32.gmra.mxu0 %v711
      %v736 = vpop.f32.mrf.mxu0
      %v737 = vadd.f32 0.0, %v736
      %738 = vmatmul.f32.gmra.mxu0 %v714
      %v739 = vpop.f32.mrf.mxu0
      %v740 = vadd.f32 0.0, %v739
      %741 = vdwg.mxu0
      %v743 = vsel %vm400, %v702, 0
      %v746 = vsel %vm400, %v703, 0
      %v749 = vsel %vm407, %v705, 0
      %751 = vmatpush.msra.mxu0 0.0
      %752 = vmatpush.msra.mxu0 0.0
      %753 = vmatpush.msra.mxu0 0.0
      %754 = vmatpush.msra.mxu0 0.0
      %755 = vmatpush.msra.mxu0 0.0
      %756 = vmatpush.msra.mxu0 0.0
      %757 = vmatpush.msra.mxu0 0.0
      %758 = vmatpush.msra.mxu0 0.0
      %759 = vmatpush.msra.mxu0 0.0
      %760 = vmatpush.msra.mxu0 0.0
      %761 = vmatpush.msra.mxu0 0.0
      %762 = vmatpush.msra.mxu0 0.0
      %763 = vmatpush.msra.mxu0 0.0
      %764 = vmatpush.msra.mxu0 0.0
      %765 = vmatpush.msra.mxu0 0.0
      %766 = vmatpush.msra.mxu0 %v749
      %767 = vmatmul.f32.gmra.mxu0 %v743
      %v768 = vpop.f32.mrf.mxu0
      %v769 = vadd.f32 %v737, %v768
      %770 = vmatmul.f32.gmra.mxu0 %v746
      %v771 = vpop.f32.mrf.mxu0
      %v772 = vadd.f32 %v740, %v771
      %773 = vdwg.mxu0
      %v774 = vld [vmem:[%s369] sm:$0xff]
      %v775 = vld [vmem:[%s369 + $0x8] sm:$0xff]
      %s776 = scalar_lea.vmem %s374, 48
      %v777 = vld [vmem:[%s776] sm:$0xf]
      %v779 = vsel %vm400, %v774, 0
      %v782 = vsel %vm400, %v775, 0
      %v785 = vsel %vm407, %v777, 0
      %787 = vmatpush.msra.mxu0 0.0
      %788 = vmatpush.msra.mxu0 0.0
      %789 = vmatpush.msra.mxu0 0.0
      %790 = vmatpush.msra.mxu0 0.0
      %791 = vmatpush.msra.mxu0 0.0
      %792 = vmatpush.msra.mxu0 0.0
      %793 = vmatpush.msra.mxu0 0.0
      %794 = vmatpush.msra.mxu0 0.0
      %795 = vmatpush.msra.mxu0 0.0
      %796 = vmatpush.msra.mxu0 0.0
      %797 = vmatpush.msra.mxu0 0.0
      %798 = vmatpush.msra.mxu0 0.0
      %799 = vmatpush.msra.mxu0 0.0
      %800 = vmatpush.msra.mxu0 0.0
      %801 = vmatpush.msra.mxu0 0.0
      %802 = vmatpush.msra.mxu0 %v785
      %803 = vmatmul.f32.gmra.mxu0 %v779
      %v804 = vpop.f32.mrf.mxu0
      %v805 = vadd.f32 0.0, %v804
      %806 = vmatmul.f32.gmra.mxu0 %v782
      %v807 = vpop.f32.mrf.mxu0
      %v808 = vadd.f32 0.0, %v807
      %809 = vdwg.mxu0
      %v810 = vadd.f32 %v769, %v805
      %v811 = vadd.f32 %v772, %v808
      %v812 = vld [vmem:[%s369 + $0x1] sm:$0xff]
      %v813 = vld [vmem:[%s369 + $0x9] sm:$0xff]
      %s814 = scalar_lea.vmem %s374, 52
      %v815 = vld [vmem:[%s814] sm:$0xf]
      %v817 = vsel %vm400, %v812, 0
      %v820 = vsel %vm400, %v813, 0
      %v823 = vsel %vm407, %v815, 0
      %825 = vmatpush.msra.mxu0 0.0
      %826 = vmatpush.msra.mxu0 0.0
      %827 = vmatpush.msra.mxu0 0.0
      %828 = vmatpush.msra.mxu0 0.0
      %829 = vmatpush.msra.mxu0 0.0
      %830 = vmatpush.msra.mxu0 0.0
      %831 = vmatpush.msra.mxu0 0.0
      %832 = vmatpush.msra.mxu0 0.0
      %833 = vmatpush.msra.mxu0 0.0
      %834 = vmatpush.msra.mxu0 0.0
      %835 = vmatpush.msra.mxu0 0.0
      %836 = vmatpush.msra.mxu0 0.0
      %837 = vmatpush.msra.mxu0 0.0
      %838 = vmatpush.msra.mxu0 0.0
      %839 = vmatpush.msra.mxu0 0.0
      %840 = vmatpush.msra.mxu0 %v823
      %841 = vmatmul.f32.gmra.mxu0 %v817
      %v842 = vpop.f32.mrf.mxu0
      %v843 = vadd.f32 0.0, %v842
      %844 = vmatmul.f32.gmra.mxu0 %v820
      %v845 = vpop.f32.mrf.mxu0
      %v846 = vadd.f32 0.0, %v845
      %847 = vdwg.mxu0
      %v848 = vadd.f32 %v810, %v843
      %v849 = vadd.f32 %v811, %v846
      %v850 = vadd.f32 %v848, %v543
      %v851 = vadd.f32 %v849, %v543
      %s852 = scalar_lea.vmem %s390, 32
      %853 = vst.msk [vmem:[%s852] sm:$0xff] %vm400, %v850
      %854 = vst.msk [vmem:[%s852 + $0x8] sm:$0xff] %vm400, %v851
      %v855 = vld [vmem:[%s358 + $0x1] sm:$0xff]
      %v856 = vld [vmem:[%s358 + $0x9] sm:$0xff]
      %s857 = scalar_lea.vmem %s374, 40
      %v858 = vld [vmem:[%s857] sm:$0xf]
      %v859 = vld [vmem:[%s358 + $0x2] sm:$0xff]
      %v860 = vld [vmem:[%s358 + $0xa] sm:$0xff]
      %s861 = scalar_lea.vmem %s374, 44
      %v862 = vld [vmem:[%s861] sm:$0xf]
      %v864 = vsel %vm400, %v859, 0
      %v867 = vsel %vm400, %v860, 0
      %v870 = vsel %vm407, %v862, 0
      %872 = vmatpush.msra.mxu0 0.0
      %873 = vmatpush.msra.mxu0 0.0
      %874 = vmatpush.msra.mxu0 0.0
      %875 = vmatpush.msra.mxu0 0.0
      %876 = vmatpush.msra.mxu0 0.0
      %877 = vmatpush.msra.mxu0 0.0
      %878 = vmatpush.msra.mxu0 0.0
      %879 = vmatpush.msra.mxu0 0.0
      %880 = vmatpush.msra.mxu0 0.0
      %881 = vmatpush.msra.mxu0 0.0
      %882 = vmatpush.msra.mxu0 0.0
      %883 = vmatpush.msra.mxu0 0.0
      %884 = vmatpush.msra.mxu0 0.0
      %885 = vmatpush.msra.mxu0 0.0
      %886 = vmatpush.msra.mxu0 0.0
      %887 = vmatpush.msra.mxu0 %v870
      %888 = vmatmul.f32.gmra.mxu0 %v864
      %v889 = vpop.f32.mrf.mxu0
      %v890 = vadd.f32 0.0, %v889
      %891 = vmatmul.f32.gmra.mxu0 %v867
      %v892 = vpop.f32.mrf.mxu0
      %v893 = vadd.f32 0.0, %v892
      %894 = vdwg.mxu0
      %v896 = vsel %vm400, %v855, 0
      %v899 = vsel %vm400, %v856, 0
      %v902 = vsel %vm407, %v858, 0
      %904 = vmatpush.msra.mxu0 0.0
      %905 = vmatpush.msra.mxu0 0.0
      %906 = vmatpush.msra.mxu0 0.0
      %907 = vmatpush.msra.mxu0 0.0
      %908 = vmatpush.msra.mxu0 0.0
      %909 = vmatpush.msra.mxu0 0.0
      %910 = vmatpush.msra.mxu0 0.0
      %911 = vmatpush.msra.mxu0 0.0
      %912 = vmatpush.msra.mxu0 0.0
      %913 = vmatpush.msra.mxu0 0.0
      %914 = vmatpush.msra.mxu0 0.0
      %915 = vmatpush.msra.mxu0 0.0
      %916 = vmatpush.msra.mxu0 0.0
      %917 = vmatpush.msra.mxu0 0.0
      %918 = vmatpush.msra.mxu0 0.0
      %919 = vmatpush.msra.mxu0 %v902
      %920 = vmatmul.f32.gmra.mxu0 %v896
      %v921 = vpop.f32.mrf.mxu0
      %v922 = vadd.f32 %v890, %v921
      %923 = vmatmul.f32.gmra.mxu0 %v899
      %v924 = vpop.f32.mrf.mxu0
      %v925 = vadd.f32 %v893, %v924
      %926 = vdwg.mxu0
      %v927 = vld [vmem:[%s369 + $0x1] sm:$0xff]
      %v928 = vld [vmem:[%s369 + $0x9] sm:$0xff]
      %s929 = scalar_lea.vmem %s374, 56
      %v930 = vld [vmem:[%s929] sm:$0xf]
      %v932 = vsel %vm400, %v927, 0
      %v935 = vsel %vm400, %v928, 0
      %v938 = vsel %vm407, %v930, 0
      %940 = vmatpush.msra.mxu0 0.0
      %941 = vmatpush.msra.mxu0 0.0
      %942 = vmatpush.msra.mxu0 0.0
      %943 = vmatpush.msra.mxu0 0.0
      %944 = vmatpush.msra.mxu0 0.0
      %945 = vmatpush.msra.mxu0 0.0
      %946 = vmatpush.msra.mxu0 0.0
      %947 = vmatpush.msra.mxu0 0.0
      %948 = vmatpush.msra.mxu0 0.0
      %949 = vmatpush.msra.mxu0 0.0
      %950 = vmatpush.msra.mxu0 0.0
      %951 = vmatpush.msra.mxu0 0.0
      %952 = vmatpush.msra.mxu0 0.0
      %953 = vmatpush.msra.mxu0 0.0
      %954 = vmatpush.msra.mxu0 0.0
      %955 = vmatpush.msra.mxu0 %v938
      %956 = vmatmul.f32.gmra.mxu0 %v932
      %v957 = vpop.f32.mrf.mxu0
      %v958 = vadd.f32 0.0, %v957
      %959 = vmatmul.f32.gmra.mxu0 %v935
      %v960 = vpop.f32.mrf.mxu0
      %v961 = vadd.f32 0.0, %v960
      %962 = vdwg.mxu0
      %v963 = vadd.f32 %v922, %v958
      %v964 = vadd.f32 %v925, %v961
      %v965 = vld [vmem:[%s369 + $0x2] sm:$0xff]
      %v966 = vld [vmem:[%s369 + $0xa] sm:$0xff]
      %s967 = scalar_lea.vmem %s374, 60
      %v968 = vld [vmem:[%s967] sm:$0xf]
      %v970 = vsel %vm400, %v965, 0
      %v973 = vsel %vm400, %v966, 0
      %v976 = vsel %vm407, %v968, 0
      %978 = vmatpush.msra.mxu0 0.0
      %979 = vmatpush.msra.mxu0 0.0
      %980 = vmatpush.msra.mxu0 0.0
      %981 = vmatpush.msra.mxu0 0.0
      %982 = vmatpush.msra.mxu0 0.0
      %983 = vmatpush.msra.mxu0 0.0
      %984 = vmatpush.msra.mxu0 0.0
      %985 = vmatpush.msra.mxu0 0.0
      %986 = vmatpush.msra.mxu0 0.0
      %987 = vmatpush.msra.mxu0 0.0
      %988 = vmatpush.msra.mxu0 0.0
      %989 = vmatpush.msra.mxu0 0.0
      %990 = vmatpush.msra.mxu0 0.0
      %991 = vmatpush.msra.mxu0 0.0
      %992 = vmatpush.msra.mxu0 0.0
      %993 = vmatpush.msra.mxu0 %v976
      %994 = vmatmul.f32.gmra.mxu0 %v970
      %v995 = vpop.f32.mrf.mxu0
      %v996 = vadd.f32 0.0, %v995
      %997 = vmatmul.f32.gmra.mxu0 %v973
      %v998 = vpop.f32.mrf.mxu0
      %v999 = vadd.f32 0.0, %v998
      %1000 = vdwg.mxu0
      %v1001 = vadd.f32 %v963, %v996
      %v1002 = vadd.f32 %v964, %v999
      %v1003 = vadd.f32 %v1001, %v543
      %v1004 = vadd.f32 %v1002, %v543
      %s1005 = scalar_lea.vmem %s390, 48
      %1006 = vst.msk [vmem:[%s1005] sm:$0xff] %vm400, %v1003
      %1007 = vst.msk [vmem:[%s1005 + $0x8] sm:$0xff] %vm400, %v1004
      %s1008 = smul.u32 2, %s23
      %p1009 = scmp.lt.s32.totalorder %s21, 1
      %s1010 = scalar_select %p1009, %s21, 1
      %p1011 = scmp.lt.s32.totalorder %s1008, 31
      %s1012 = scalar_select %p1011, %s1008, 31
      %p1013 = scmp.lt.s32.totalorder %s22, 0
      %s1014 = scalar_select %p1013, %s22, 0
      %s1015 = smul.addr %s1012, 4
      %s1016 = sadd.s32 %s1014, %s1015
      %s1017 = smul.addr %s1010, 128
      %s1018 = sadd.s32 %s1016, %s1017
      %s1019 = smul.addr %s1018, 8
      %s1020 = scalar_lea.vmem %s5, %s1019
      // Predicated region
      $region41: #{tpu_custom_call.1} parent=39 // pred_check
        %p1021 = pneg %p197
      $region42: #{tpu_custom_call.1} parent=39 // pred_check_branch
        %1023 = sbr.rel (%p1021) target = $region44
      $region43: #{tpu_custom_call.1} parent=39 // pred_region
        %s1024 = smul.u32 2, %s23
      $region44: #{tpu_custom_call.1} parent=39 // pred_fallthru
        _
    $region40: #{tpu_custom_call.1} parent=5 // pred_fallthru
      _
    %p1025 = scmp.le.s32.totalorder 2, %s11
    // Predicated region
    $region45: #{tpu_custom_call.1} parent=5 // pred_check
      %p1026 = pneg %p1025
    $region46: #{tpu_custom_call.1} parent=5 // pred_check_branch
      %1028 = sbr.rel (%p1026) target = $region48
    $region47: #{tpu_custom_call.1} parent=5 // pred_region
      %s1029 = ssub.s32 %s11, 2
      // Predicated region
      $region49: #{tpu_custom_call.1} parent=47 // pred_check
        %p1030 = pneg %p203
      $region50: #{tpu_custom_call.1} parent=47 // pred_check_branch
        %1032 = sbr.rel (%p1030) target = $region52
      $region51: #{tpu_custom_call.1} parent=47 // pred_region
        %s1033 = smul.u32 2, %s26
        %p1034 = scmp.lt.s32.totalorder %s24, 1
        %s1035 = scalar_select %p1034, %s24, 1
        %p1036 = scmp.lt.s32.totalorder %s1033, 31
        %s1037 = scalar_select %p1036, %s1033, 31
        %p1038 = scmp.lt.s32.totalorder %s25, 0
        %s1039 = scalar_select %p1038, %s25, 0
        %s1040 = smul.addr %s1037, 4
        %s1041 = sadd.s32 %s1039, %s1040
        %s1042 = smul.addr %s1035, 128
        %s1043 = sadd.s32 %s1041, %s1042
        %s1044 = smul.addr %s1043, 8
        %s1045 = scalar_lea.vmem %s5, %s1044
      $region52: #{tpu_custom_call.1} parent=47 // pred_fallthru
        _
    $region48: #{tpu_custom_call.1} parent=5 // pred_fallthru
      _
  $region6: #{tpu_custom_call.1} parent=0 // loop_footer
    %s15 = sadd.s32 1, %s11
  $region7: #{tpu_custom_call.1} parent=0 // loop_footer_branch
    %10 = sbr.rel target = $region3
  $region8: #{tpu_custom_call.1} parent=0 // loop_exit
    _

</llo_original>
